<compile_context>
chip_gen: v7x
topology: tpu7x:2x2x1
jax: 0.10.0
libtpu: 0.0.40
codegen_flags: <defaults>
</compile_context>

<pallas_src>
import functools

import jax
import jax.numpy as jnp
from jax.experimental import pallas as pl
from jax.experimental.pallas import tpu as pltpu


def _probe_kernel(x_ref, w_ref, b_ref, o_ref, acc_ref, *, seq_len, seq_block, need_mask):
    # x_ref:   (bb, ts, H) VMEM tile of activations
    # w_ref:   (1, H)      VMEM, lane-dense probe weight (resident, never re-indexed)
    # b_ref:   (1, 1)      SMEM scalar bias
    # o_ref:   (bb, 1)     output tile (same block across the S grid axis)
    # acc_ref: (bb, 1)     f32 running sum scratch
    s = pl.program_id(1)

    @pl.when(s == 0)
    def _init():
        acc_ref[...] = jnp.zeros_like(acc_ref)

    x = x_ref[...].astype(jnp.float32)          # (bb, ts, H)  — upcast after load
    w = w_ref[...].astype(jnp.float32)          # (1, H)       — broadcasts over (bb, ts, H)

    # VPU multiply + cross-lane reduce over H (no MXU, no reshapes).
    partial = jnp.sum(x * w, axis=-1)           # (bb, ts) f32

    if need_mask:  # static: only emitted when the last S block is ragged
        seq_ids = s * seq_block + jax.lax.broadcasted_iota(jnp.int32, partial.shape, 1)
        partial = jnp.where(seq_ids < seq_len, partial, 0.0)

    acc_ref[...] += jnp.sum(partial, axis=-1, keepdims=True)   # (bb, 1)

    @pl.when(s == pl.num_programs(1) - 1)
    def _finalize():
        inv_s = jnp.float32(1.0 / seq_len)
        o_ref[...] = (acc_ref[...] * inv_s + b_ref[0, 0]).astype(o_ref.dtype)


def _round_down_multiple(x, m):
    return (x // m) * m


def probe_forward(x, weight, bias, *, target_block_bytes=4 * 1024 * 1024):
    """x: (B, S, H); weight: (1, H) (PyTorch Linear layout, NOT transposed); bias: (1,)."""
    B, S, H = x.shape
    out_dtype = x.dtype

    # Batch block: multiple of 8 when possible (keeps the (bb, 1) output block legal),
    # otherwise the full batch extent.
    bb = 8 if (B % 8 == 0) else B

    # Sequence block: ~target_block_bytes per x buffer, multiple of 8, full extent if small.
    itemsize = jnp.dtype(x.dtype).itemsize
    row_bytes = bb * H * itemsize
    ts = max(8, _round_down_multiple(max(target_block_bytes // row_bytes, 1), 8))
    if ts >= S or S < 8:
        ts = S  # full extent — always legal
    need_mask = (S % ts) != 0

    grid = (pl.cdiv(B, bb), pl.cdiv(S, ts))

    w_row = weight.reshape(1, H)                          # lane-dense (1, H)
    b2 = bias.reshape(1, 1).astype(jnp.float32)           # SMEM scalar

    kernel = functools.partial(
        _probe_kernel, seq_len=S, seq_block=ts, need_mask=need_mask
    )

    cost = pl.CostEstimate(
        flops=2 * B * S * H,
        transcendentals=0,
        bytes_accessed=(B * S * H * itemsize
                        + H * jnp.dtype(weight.dtype).itemsize
                        + 4
                        + B * jnp.dtype(out_dtype).itemsize),
    )

    return pl.pallas_call(
        kernel,
        out_shape=jax.ShapeDtypeStruct((B, 1), out_dtype),
        grid=grid,
        in_specs=[
            pl.BlockSpec((bb, ts, H), lambda b, s: (b, s, 0)),            # x tiles (streamed)
            pl.BlockSpec(memory_space=pltpu.MemorySpace.VMEM),            # weight, resident
            pl.BlockSpec(memory_space=pltpu.MemorySpace.SMEM),            # bias scalar
        ],
        out_specs=pl.BlockSpec((bb, 1), lambda b, s: (b, 0)),             # constant over S
        scratch_shapes=[pltpu.VMEM((bb, 1), jnp.float32)],
        compiler_params=pltpu.CompilerParams(
            dimension_semantics=("parallel", "arbitrary"),
        ),
        cost_estimate=cost,
    )(x, w_row, b2)


def _reference(x, weight, bias):
    xf = x.astype(jnp.float32)
    wf = weight.astype(jnp.float32)
    bf = bias.astype(jnp.float32)
    return jnp.mean(xf @ wf.T + bf, axis=1)  # (B, 1) f32


if __name__ == "__main__":
    key = jax.random.PRNGKey(0)

    # --- Check 1: small shapes consistent with the module (batch=2, seq=8, hidden=32) ---
    B, S, H = 2, 8, 32
    kx, kw, kb = jax.random.split(key, 3)
    x = jax.random.normal(kx, (B, S, H), dtype=jnp.float32)
    weight = jax.random.normal(kw, (1, H), dtype=jnp.float32) * (1.0 / jnp.sqrt(H))
    bias = jax.random.normal(kb, (1,), dtype=jnp.float32) * 0.01

    out = jax.block_until_ready(probe_forward(x, weight, bias))
    ref = _reference(x, weight, bias)
    assert out.shape == (B, 1)
    assert jnp.allclose(out, ref, atol=1e-5, rtol=1e-5)

    # --- Check 2: exercise the grid (multiple B and S blocks + ragged final S block) ---
    B2, S2, H2 = 16, 68, 128
    kx2, kw2, kb2 = jax.random.split(jax.random.PRNGKey(1), 3)
    x2 = jax.random.normal(kx2, (B2, S2, H2), dtype=jnp.float32)
    w2 = jax.random.normal(kw2, (1, H2), dtype=jnp.float32) * (1.0 / jnp.sqrt(H2))
    b2 = jax.random.normal(kb2, (1,), dtype=jnp.float32) * 0.01

    out2 = jax.block_until_ready(
        probe_forward(x2, w2, b2, target_block_bytes=16 * 1024)  # tiny tiles -> many S blocks
    )
    ref2 = _reference(x2, w2, b2)
    assert out2.shape == (B2, 1)
    assert jnp.allclose(out2, ref2, atol=1e-4, rtol=1e-4)

    # --- Check 3: bf16 activations (bandwidth-bound path), f32 accumulation in-kernel ---
    x3 = x2.astype(jnp.bfloat16)
    out3 = jax.block_until_ready(probe_forward(x3, w2, b2))
    ref3 = _reference(x3, w2, b2)
    assert jnp.allclose(out3.astype(jnp.float32), ref3, atol=2e-2, rtol=2e-2)

    print("KERNEL_OK")
</pallas_src>

<mosaic_0001>
module attributes {stable_mosaic.version = 11 : i64} {
  func.func @_probe_kernel(%arg0: i32, %arg1: i32, %arg2: memref<2x8x32xf32, #tpu.memory_space<vmem>>, %arg3: memref<1x32xf32, #tpu.memory_space<vmem>>, %arg4: memref<1x1xf32, #tpu.memory_space<smem>>, %arg5: memref<2x1xf32, #tpu.memory_space<vmem>>, %arg6: memref<2x1xf32, #tpu.memory_space<vmem>>) attributes {dimension_semantics = [#tpu.dimension_semantics<parallel>, #tpu.dimension_semantics<arbitrary>], iteration_bounds = array<i64: 1, 1>, scalar_prefetch = 0 : i64, scratch_operands = 1 : i64, tpu.core_type = #tpu.core_type<tc>, window_params = [{transform_indices = @transform_0, window_bounds = array<i64: 2, 8, 32>}, {pipeline_mode = #tpu.pipeline_mode<synchronous>, transform_indices = @transform_1, window_bounds = array<i64: 1, 32>}, {transform_indices = @transform_2, window_bounds = array<i64: 1, 1>}, {transform_indices = @transform_3, window_bounds = array<i64: 2, 1>}]} {
    %c0_i32 = arith.constant 0 : i32
    %0 = arith.cmpi eq, %arg1, %c0_i32 : i32
    %1 = arith.extui %0 : i1 to i32
    %c0_i32_0 = arith.constant 0 : i32
    %2 = arith.cmpi ne, %1, %c0_i32_0 : i32
    scf.if %2 {
      %cst_12 = arith.constant 0.000000e+00 : f32
      %17 = vector.broadcast %cst_12 : f32 to vector<2x1xf32>
      %c0_13 = arith.constant 0 : index
      %c0_14 = arith.constant 0 : index
      %18 = vector.load %arg6[%c0_13, %c0_14] : memref<2x1xf32, #tpu.memory_space<vmem>>, vector<2x1xf32>
      tpu.vector_store %arg6[%c0_13, %c0_14], %17 {strides = array<i32>} : memref<2x1xf32, #tpu.memory_space<vmem>>, vector<2x1xf32>,
    } else {
    }
    %c0 = arith.constant 0 : index
    %c0_1 = arith.constant 0 : index
    %c0_2 = arith.constant 0 : index
    %3 = vector.load %arg2[%c0, %c0_1, %c0_2] : memref<2x8x32xf32, #tpu.memory_space<vmem>>, vector<2x8x32xf32>
    %c0_3 = arith.constant 0 : index
    %c0_4 = arith.constant 0 : index
    %4 = vector.load %arg3[%c0_3, %c0_4] : memref<1x32xf32, #tpu.memory_space<vmem>>, vector<1x32xf32>
    %5 = vector.shape_cast %4 : vector<1x32xf32> to vector<1x1x32xf32>
    %6 = vector.broadcast %5 : vector<1x1x32xf32> to vector<2x8x32xf32>
    %7 = arith.mulf %3, %6 : vector<2x8x32xf32>
    %cst = arith.constant dense<0.000000e+00> : vector<2x8xf32>
    %8 = vector.multi_reduction <add>, %7, %cst [2] : vector<2x8x32xf32> to vector<2x8xf32>
    %c0_5 = arith.constant 0 : index
    %c0_6 = arith.constant 0 : index
    %9 = vector.load %arg6[%c0_5, %c0_6] : memref<2x1xf32, #tpu.memory_space<vmem>>, vector<2x1xf32>
    %cst_7 = arith.constant dense<0.000000e+00> : vector<2xf32>
    %10 = vector.multi_reduction <add>, %8, %cst_7 [1] : vector<2x8xf32> to vector<2xf32>
    %11 = vector.shape_cast %10 : vector<2xf32> to vector<2x1xf32>
    %12 = arith.addf %9, %11 : vector<2x1xf32>
    %c0_8 = arith.constant 0 : index
    %c0_9 = arith.constant 0 : index
    %13 = vector.load %arg6[%c0_8, %c0_9] : memref<2x1xf32, #tpu.memory_space<vmem>>, vector<2x1xf32>
    tpu.vector_store %arg6[%c0_8, %c0_9], %12 {strides = array<i32>} : memref<2x1xf32, #tpu.memory_space<vmem>>, vector<2x1xf32>,
    %c0_i32_10 = arith.constant 0 : i32
    %14 = arith.cmpi eq, %arg1, %c0_i32_10 : i32
    %15 = arith.extui %14 : i1 to i32
    %c0_i32_11 = arith.constant 0 : i32
    %16 = arith.cmpi ne, %15, %c0_i32_11 : i32
    scf.if %16 {
      %c0_12 = arith.constant 0 : index
      %c0_13 = arith.constant 0 : index
      %17 = vector.load %arg6[%c0_12, %c0_13] : memref<2x1xf32, #tpu.memory_space<vmem>>, vector<2x1xf32>
      %cst_14 = arith.constant 1.250000e-01 : f32
      %18 = vector.broadcast %cst_14 : f32 to vector<2x1xf32>
      %19 = arith.mulf %17, %18 : vector<2x1xf32>
      %c0_15 = arith.constant 0 : index
      %c0_16 = arith.constant 0 : index
      %20 = memref.load %arg4[%c0_15, %c0_16] : memref<1x1xf32, #tpu.memory_space<smem>>
      %21 = vector.broadcast %20 : f32 to vector<2x1xf32>
      %22 = arith.addf %19, %21 : vector<2x1xf32>
      %c0_17 = arith.constant 0 : index
      %c0_18 = arith.constant 0 : index
      %23 = vector.load %arg5[%c0_17, %c0_18] : memref<2x1xf32, #tpu.memory_space<vmem>>, vector<2x1xf32>
      tpu.vector_store %arg5[%c0_17, %c0_18], %22 {strides = array<i32>} : memref<2x1xf32, #tpu.memory_space<vmem>>, vector<2x1xf32>,
    } else {
    }
    return
  }
  func.func @transform_0(%arg0: i32, %arg1: i32) -> (i32, i32, i32) {
    %c0_i32 = arith.constant 0 : i32
    %c0_i32_0 = arith.constant 0 : i32
    return %arg0, %arg1, %c0_i32 : i32, i32, i32
  }
  func.func @transform_1(%arg0: i32, %arg1: i32) -> (i32, i32) {
    %c0_i32 = arith.constant 0 : i32
    %c0_i32_0 = arith.constant 0 : i32
    %c0_i32_1 = arith.constant 0 : i32
    return %c0_i32, %c0_i32_0 : i32, i32
  }
  func.func @transform_2(%arg0: i32, %arg1: i32) -> (i32, i32) {
    %c0_i32 = arith.constant 0 : i32
    %c0_i32_0 = arith.constant 0 : i32
    %c0_i32_1 = arith.constant 0 : i32
    return %c0_i32, %c0_i32_0 : i32, i32
  }
  func.func @transform_3(%arg0: i32, %arg1: i32) -> (i32, i32) {
    %c0_i32 = arith.constant 0 : i32
    %c0_i32_0 = arith.constant 0 : i32
    return %arg0, %c0_i32 : i32, i32
  }
}

</mosaic_0001>

<llo_original>
// kernel: tpu_custom_call.1
$region0: #{tpu_custom_call.1}
  #allocation0 [shape = 'u32[]', space=smem, size = 0x4, offset = 0x4, fixed_abs, tag = 'smem constant byte address 0x4 - core index']
  #allocation1 [shape = 'u32[144,128]{1,0:T(1,128)}', space=vmem, size = 0x12000, scoped, tag = 'internal scratch']
  #allocation2 [shape = 'f32[2,1]{1,0:T(2,128)}', space=vmem, size = 0x400, scoped, tag = 'scratch operand']
  #allocation3 [shape = 'f32[1,1]{1,0:T(1,128)S(6)}', space=smem, size = 0x200, scoped, tag = 'scoped memory for tpu_custom_call.1']
  %s0 = inlined_call_operand.hbm [shape: f32[2,8,32], index: 0, kind: input, shape index: {}]
  %s1 = inlined_call_operand.vmem [shape: f32[1,32], index: 1, kind: input, shape index: {}]
  %s2 = inlined_call_operand.<no memory space> [shape: f32[1,1], index: 2, kind: input, shape index: {}]
  %s3 = inlined_call_operand.vmem [shape: f32[2,1], index: 3, kind: output, shape index: {}]
  %s4 = sld [smem:[#allocation0]]
  $region34: #{tpu_custom_call.1} parent=0
    _
  %s6 = ssub.s32 1, %s4
  %s7 = scalar_select 0, %s6, %s4
  %8 = sst [smem:[#allocation3]] %s2
  $region1: #{tpu_custom_call.1} parent=0
    #allocation4 [shape = 'u8[8192]{0}', space=vmem, size = 0x2000, scoped, tag = 'input window, operand 0, single buffered']
    #allocation5 [shape = 's32[1]{0}', space=sflag, size = 0x4, scoped, tag = 'scoped memory for tpu_custom_call.1']
    %9 = vsyncpa [#allocation5], 0
    // Predicated region
    $region2: #{tpu_custom_call.1} parent=1 // pred_check
      _
    $region3: #{tpu_custom_call.1} parent=1 // pred_check_branch
      %11 = sbr.rel (0) target = $region5
    $region4: #{tpu_custom_call.1} parent=1 // pred_region
      %s13 = ssub.s32 256, 256
      %14 = vsyncadd [#allocation5], %s13
      %s15 = sshll.u32 [#allocation4], 4
      %s16 = int_to_ptr.vmem [resolvable:$true] %s15
      %21 = dma.hbm_to_vmem [thread:$0]  %s0, 256, %s16, [#allocation5], 128, 128, 8
    $region5: #{tpu_custom_call.1} parent=1 // pred_fallthru
      _
    // Predicated region
    $region6: #{tpu_custom_call.1} parent=1 // pred_check
      _
    $region7: #{tpu_custom_call.1} parent=1 // pred_check_branch
      %23 = sbr.rel (0) target = $region9
    $region8: #{tpu_custom_call.1} parent=1 // pred_region
      _
    $region9: #{tpu_custom_call.1} parent=1 // pred_fallthru
      _
    // Predicated region
    $region10: #{tpu_custom_call.1} parent=1 // pred_check
      _
    $region11: #{tpu_custom_call.1} parent=1 // pred_check_branch
      %25 = sbr.rel (0) target = $region13
    $region12: #{tpu_custom_call.1} parent=1 // pred_region
      _
    $region13: #{tpu_custom_call.1} parent=1 // pred_fallthru
      _
    // Predicated region
    $region14: #{tpu_custom_call.1} parent=1 // pred_check
      _
    $region15: #{tpu_custom_call.1} parent=1 // pred_check_branch
      %27 = sbr.rel (0) target = $region17
    $region16: #{tpu_custom_call.1} parent=1 // pred_region
      %28 = dma.done [#allocation5], 256
    $region17: #{tpu_custom_call.1} parent=1 // pred_fallthru
      _
    %p29 = scmp.eq.s32.totalorder 0, 0
    // Predicated region
    $region18: #{tpu_custom_call.1} parent=1 // pred_check
      %p30 = pneg %p29
    $region19: #{tpu_custom_call.1} parent=1 // pred_check_branch
      %32 = sbr.rel (%p30) target = $region21
    $region20: #{tpu_custom_call.1} parent=1 // pred_region
      %vm33 = vcmask 1024
      %34 = vst.msk [vmem:[#allocation2] sm:$0x3] %vm33, 0.0
    $region21: #{tpu_custom_call.1} parent=1 // pred_fallthru
      _
    %v35 = vld [vmem:[#allocation4] sm:$0xff]
    %v36 = vld [vmem:[#allocation4 + $0x8] sm:$0xff]
    %v37 = vld [vmem:[%s1] sm:$0x1]
    %v39 = vlaneseq
    %v40 = vshrl.u32 %v39, 7
    %v41 = vsub.s32 0, %v40
    %v42 = vrot.slane %v37, %v41
    %v44 = vmul.f32 %v35, %v42
    %v45 = vmul.f32 %v36, %v42
    %vm46 = vcmask 261120
    %v47 = vsel %vm46, %v44, 0.0
    %48 = vadd.xlane.f32.xlu0 %v47
    %v49 = vpop.xlane.xlu0 %48
    %v50 = vsel %vm46, %v45, 0.0
    %51 = vadd.xlane.f32.xlu0 %v50
    %v52 = vpop.xlane.xlu0 %51
    %v53 = vld [vmem:[#allocation2] sm:$0x3]
    %v56 = vlaneseq
    %v57 = vand.u32 %v56, 127
    %v58 = vlaneseq
    %v59 = vshrl.u32 %v58, 7
    %v60 = vsub.s32 %v57, %v59
    %v61 = vrot.slane %v49, %v60
    %v62 = vlaneseq
    %v63 = vshrl.u32 %v62, 7
    %v64 = vsub.s32 %v57, %v63
    %v65 = vrot.slane %v52, %v64
    %vm66 = vcmask 1041409
    %v67 = vsel %vm66, %v65, %v61
    %vm69 = vcmask 58368
    %v70 = vsel %vm69, %v67, 0.0
    %71 = vadd.xlane.f32.xlu0 %v70
    %v72 = vpop.xlane.xlu0 %71
    %v73 = vadd.f32 %v53, %v72
    %vm74 = vcmask 1024
    %75 = vst.msk [vmem:[#allocation2] sm:$0x3] %vm74, %v73
    // Predicated region
    $region22: #{tpu_custom_call.1} parent=1 // pred_check
      %p76 = pneg %p29
    $region23: #{tpu_custom_call.1} parent=1 // pred_check_branch
      %78 = sbr.rel (%p76) target = $region25
    $region24: #{tpu_custom_call.1} parent=1 // pred_region
      %v79 = vld [vmem:[#allocation2] sm:$0x3]
      %v80 = vmul.f32 %v79, 0.125
      %s81 = sld [smem:[#allocation3]]
      %v82 = vstv %s81
      %v83 = vadd.f32 %v80, %v82
      %84 = vst.msk [vmem:[%s3] sm:$0x3] %vm74, %v83
    $region25: #{tpu_custom_call.1} parent=1 // pred_fallthru
      _
    // Predicated region
    $region26: #{tpu_custom_call.1} parent=1 // pred_check
      _
    $region27: #{tpu_custom_call.1} parent=1 // pred_check_branch
      %86 = sbr.rel (0) target = $region29
    $region28: #{tpu_custom_call.1} parent=1 // pred_region
      _
    $region29: #{tpu_custom_call.1} parent=1 // pred_fallthru
      _
    // Predicated region
    $region30: #{tpu_custom_call.1} parent=1 // pred_check
      _
    $region31: #{tpu_custom_call.1} parent=1 // pred_check_branch
      %88 = sbr.rel (0) target = $region33
    $region32: #{tpu_custom_call.1} parent=1 // pred_region
      _
    $region33: #{tpu_custom_call.1} parent=1 // pred_fallthru
      _
    %89 = vsyncpa [#allocation5], 1

</llo_original>
